<compile_context>
chip_gen: v5e
topology: v5e:2x2
jax: 0.10.0
libtpu: 0.0.40
codegen_flags: <defaults>
</compile_context>

<pallas_src>
import functools
import random

import jax
import jax.numpy as jnp
from jax.experimental import pallas as pl
from jax.experimental.pallas import tpu as pltpu


def _ens_kernel(x_ref, w_ref, b_ref, o_ref, pooled_acc, feats_acc, *, inv_hw):
    """One grid step of the fused GAP + multi-head linear ensemble.

    Grid = (n_b, n_c, n_hw); c and hw (innermost) are reduction axes.

    x_ref:      (b_tile, c_tile, hw_tile) f32 -- streamed input tile
    w_ref:      (c_tile, EF_pad)          f32 -- fused weights (C slab, all members)
    b_ref:      (1, EF_pad)               f32 -- fused biases
    o_ref:      (b_tile, EF_pad)          f32 -- fused features, resident, written once
    pooled_acc: (b_tile, c_tile)          f32 -- GAP accumulator for current C slab
    feats_acc:  (b_tile, EF_pad)          f32 -- matmul accumulator across C slabs
    """
    c = pl.program_id(1)
    t = pl.program_id(2)
    nc = pl.num_programs(1)
    nt = pl.num_programs(2)

    @pl.when(jnp.logical_and(c == 0, t == 0))
    def _():
        feats_acc[...] = jnp.zeros_like(feats_acc)

    @pl.when(t == 0)
    def _():
        pooled_acc[...] = jnp.zeros_like(pooled_acc)

    # Spatial partial-sum for this tile: the GAP runs exactly once and is
    # shared by every selected member.  Zero-padded HW tail contributes 0.
    # TODO(synk): on v7x, if a bundle dump shows the cross-lane reduce binding
    # against 3.2 TB/s HBM, switch to an MXU ones-vector reduction.
    pooled_acc[...] += jnp.sum(x_ref[...], axis=-1)

    @pl.when(t == nt - 1)
    def _():
        # K-accumulation over C slabs: feats += pooled_cblk @ w_cblk (MXU, f32 acc).
        feats_acc[...] += jnp.dot(pooled_acc[...] * inv_hw, w_ref[...],
                                  preferred_element_type=jnp.float32)

    @pl.when(jnp.logical_and(c == nc - 1, t == nt - 1))
    def _():
        # Single lane-dense store of the fused (128-padded) output block.
        o_ref[...] = (feats_acc[...] + b_ref[...]).astype(o_ref.dtype)


def _working_set_bytes(b_tile, c_tile, hw_tile, ef_pad, elt=4):
    x_bufs = 2 * b_tile * c_tile * hw_tile * elt          # double-buffered stream
    w_bufs = 2 * c_tile * ef_pad * elt                     # double-buffered C slab
    bias = 2 * ef_pad * elt
    out = 2 * b_tile * ef_pad * elt
    scratch = (b_tile * max(c_tile, 128) + b_tile * ef_pad) * elt
    return x_bufs + w_bufs + bias + out + scratch


def _choose_tiles(b_tile, C, HW_pad, ef_pad, budget_bytes):
    """Pick (c_tile, hw_tile) so the full working set fits the VMEM budget.

    Respects the (8, 128) block rule (c_tile multiple of 8 or full C; hw_tile
    multiple of 128) and prefers the largest lane-dense hw tile first.
    """
    if C % 8 == 0:
        c_cands = [d for d in range(C, 0, -8) if C % d == 0]
    else:
        c_cands = [C]                       # must take the full (small) C dim
    if HW_pad % 128 == 0:
        hw_cands = [d for d in range(HW_pad, 0, -128) if HW_pad % d == 0]
    else:
        hw_cands = [HW_pad]
    for hw_t in hw_cands:
        for c_t in c_cands:
            if _working_set_bytes(b_tile, c_t, hw_t, ef_pad) <= budget_bytes:
                return c_t, hw_t
    return c_cands[-1], hw_cands[-1]


@jax.jit
def random_ens_forward(x_nchw, all_w_cmf, all_b_mf, idx):
    """Run all selected ensemble members in ONE pallas_call / ONE fused matmul.

    x_nchw:    (B, C, H, W) f32
    all_w_cmf: (C, M, F)    f32  all sub-model weights, C-major (gather, no transpose)
    all_b_mf:  (M, F)       f32  all sub-model biases
    idx:       (E,)         i32  selected member indices (traced)
    returns    (E, B, F)    f32
    """
    B, C, H, W = x_nchw.shape
    _, _, F = all_w_cmf.shape
    E = idx.shape[0]
    HW = H * W
    EF = E * F
    EF_pad = ((EF + 127) // 128) * 128              # lane-dense output stores

    # Member gather + fuse into the matmul N dimension: w_fused[c, e*F+f].
    w_fused = jnp.take(all_w_cmf, idx, axis=1).reshape(C, EF)
    b_fused = jnp.take(all_b_mf, idx, axis=0).reshape(1, EF)
    if EF_pad != EF:
        w_fused = jnp.pad(w_fused, ((0, 0), (0, EF_pad - EF)))
        b_fused = jnp.pad(b_fused, ((0, 0), (0, EF_pad - EF)))
    # TODO(synk): stream w_fused as bf16 (f32 accumulation via
    # preferred_element_type) to halve resident weight VMEM/DMA at large C*E*F.

    # Input stays f32 end-to-end (no standalone convert pass over x); pad HW
    # to a multiple of 128 so every streamed block is lane-aligned.
    HW_pad = ((HW + 127) // 128) * 128
    x_flat = x_nchw.reshape(B, C, HW)
    if HW_pad != HW:
        x_flat = jnp.pad(x_flat, ((0, 0), (0, 0), (0, HW_pad - HW)))

    # Megacore: split batch across the two v7x TensorCores when b_tile stays
    # 8-aligned; size-1 axis (harmless) on single-TC v5e/v6e or small B.
    n_b = 2 if (B % 16 == 0) else 1
    b_tile = B // n_b

    # Budget-driven tiling; budget sized for the smallest physical VMEM (v7x).
    budget = 32 * 1024 * 1024
    c_tile, hw_tile = _choose_tiles(b_tile, C, HW_pad, EF_pad, budget)
    n_c = C // c_tile
    n_hw = HW_pad // hw_tile

    footprint = _working_set_bytes(b_tile, c_tile, hw_tile, EF_pad)
    vmem_limit = int(min(64 * 1024 * 1024,
                         max(32 * 1024 * 1024, footprint + (8 << 20))))

    kernel = functools.partial(_ens_kernel, inv_hw=1.0 / float(HW))

    out = pl.pallas_call(
        kernel,
        out_shape=jax.ShapeDtypeStruct((B, EF_pad), jnp.float32),
        grid_spec=pltpu.PrefetchScalarGridSpec(
            num_scalar_prefetch=0,
            grid=(n_b, n_c, n_hw),
            in_specs=[
                # streamed f32 input tile, advances along (b, c, hw)
                pl.BlockSpec((b_tile, c_tile, hw_tile),
                             lambda b, c, t: (b, c, t)),
                # fused weight C-slab: advances along c only
                pl.BlockSpec((c_tile, EF_pad), lambda b, c, t: (c, 0)),
                # fused bias: constant index -> DMA'd once, resident
                pl.BlockSpec((1, EF_pad), lambda b, c, t: (0, 0)),
            ],
            # constant over (c, hw): output block stays resident per batch
            # block and is written exactly once on the last reduction step.
            out_specs=pl.BlockSpec((b_tile, EF_pad), lambda b, c, t: (b, 0)),
            scratch_shapes=[
                pltpu.VMEM((b_tile, c_tile), jnp.float32),   # pooled_acc
                pltpu.VMEM((b_tile, EF_pad), jnp.float32),   # feats_acc
            ],
        ),
        compiler_params=pltpu.CompilerParams(
            dimension_semantics=("parallel", "arbitrary", "arbitrary"),
            vmem_limit_bytes=vmem_limit,
        ),
    )(x_flat, w_fused, b_fused)

    # (B, EF_pad) -> drop lane padding -> (E, B, F)
    return jnp.transpose(out[:, :EF].reshape(B, E, F), (1, 0, 2))


class RandomEnsModelPallas:
    """JAX/Pallas port of RandomEnsModel with synthetic GAP+linear sub-models."""

    def __init__(self, num_models, in_channels, feat_dim, ens_num=1, seed=0):
        self.ens_num = ens_num
        self.num_models = num_models
        self.last_indexes = None
        key = jax.random.PRNGKey(seed)
        kw, kb = jax.random.split(key)
        # Stored C-major so per-call member selection is a gather (no transpose copy).
        self.all_w = (jax.random.normal(
            kw, (in_channels, num_models, feat_dim), jnp.float32) * 0.1)
        self.all_b = (jax.random.normal(
            kb, (num_models, feat_dim), jnp.float32) * 0.01)

    def __call__(self, x, use_last_models=False):
        # TODO(synk): for very large model pools, move member selection into the
        # kernel via scalar-prefetched indices (PrefetchScalarGridSpec).
        if use_last_models:
            assert self.last_indexes is not None
            indexes = self.last_indexes
        else:
            indexes = random.sample(range(self.num_models), self.ens_num)
            self.last_indexes = indexes
        idx = jnp.asarray(indexes, dtype=jnp.int32)
        feats = random_ens_forward(x, self.all_w, self.all_b, idx)  # (E, B, F)
        # Match PyTorch semantics: return a python list of per-model features.
        return [feats[e] for e in range(self.ens_num)]


if __name__ == "__main__":
    random.seed(0)

    B, C, H, W = 2, 4, 16, 16
    FEAT_DIM = 32
    NUM_MODELS = 3
    ENS_NUM = 2

    x = jax.random.normal(jax.random.PRNGKey(0), (B, C, H, W), jnp.float32)

    model = RandomEnsModelPallas(
        num_models=NUM_MODELS, in_channels=C, feat_dim=FEAT_DIM,
        ens_num=ENS_NUM, seed=0)

    feats_list = model(x)
    feats_list = [jax.block_until_ready(f) for f in feats_list]

    # Pure-JAX f32 reference (kernel path is now f32 end-to-end).
    pooled_ref = jnp.mean(x.reshape(B, C, H * W), axis=-1)          # (B, C)
    ok = True
    for e, i in enumerate(model.last_indexes):
        ref = pooled_ref @ model.all_w[:, i, :] + model.all_b[i][None, :]
        ok &= bool(jnp.allclose(feats_list[e], ref, atol=1e-4, rtol=1e-4))

    # Second call re-using the last sampled models (use_last_models=True path).
    feats_list2 = model(x, use_last_models=True)
    feats_list2 = [jax.block_until_ready(f) for f in feats_list2]
    ok &= all(bool(jnp.allclose(a, b)) for a, b in zip(feats_list, feats_list2))

    print("KERNEL_OK" if ok else "KERNEL_MISMATCH")
</pallas_src>

<mosaic_0001>
module attributes {stable_mosaic.version = 11 : i64} {
  func.func @_ens_kernel(%arg0: i32, %arg1: i32, %arg2: i32, %arg3: memref<2x4x256xf32, #tpu.memory_space<vmem>>, %arg4: memref<4x128xf32, #tpu.memory_space<vmem>>, %arg5: memref<1x128xf32, #tpu.memory_space<vmem>>, %arg6: memref<2x128xf32, #tpu.memory_space<vmem>>, %arg7: memref<2x4xf32, #tpu.memory_space<vmem>>, %arg8: memref<2x128xf32, #tpu.memory_space<vmem>>) attributes {dimension_semantics = [#tpu.dimension_semantics<parallel>, #tpu.dimension_semantics<arbitrary>, #tpu.dimension_semantics<arbitrary>], iteration_bounds = array<i64: 1, 1, 1>, scalar_prefetch = 0 : i64, scratch_operands = 2 : i64, tpu.core_type = #tpu.core_type<tc>, window_params = [{transform_indices = @transform_0, window_bounds = array<i64: 2, 4, 256>}, {transform_indices = @transform_1, window_bounds = array<i64: 4, 128>}, {pipeline_mode = #tpu.pipeline_mode<synchronous>, transform_indices = @transform_2, window_bounds = array<i64: 1, 128>}, {transform_indices = @transform_3, window_bounds = array<i64: 2, 128>}]} {
    %c0_i32 = arith.constant 0 : i32
    %0 = arith.cmpi eq, %arg1, %c0_i32 : i32
    %c0_i32_0 = arith.constant 0 : i32
    %1 = arith.cmpi eq, %arg2, %c0_i32_0 : i32
    %2 = arith.andi %0, %1 : i1
    %3 = arith.extui %2 : i1 to i32
    %c0_i32_1 = arith.constant 0 : i32
    %4 = arith.cmpi ne, %3, %c0_i32_1 : i32
    scf.if %4 {
      %cst_15 = arith.constant 0.000000e+00 : f32
      %21 = vector.broadcast %cst_15 : f32 to vector<2x128xf32>
      %c0_16 = arith.constant 0 : index
      %c0_17 = arith.constant 0 : index
      %22 = vector.load %arg8[%c0_16, %c0_17] : memref<2x128xf32, #tpu.memory_space<vmem>>, vector<2x128xf32>
      tpu.vector_store %arg8[%c0_16, %c0_17], %21 {strides = array<i32>} : memref<2x128xf32, #tpu.memory_space<vmem>>, vector<2x128xf32>,
    } else {
    }
    %c0_i32_2 = arith.constant 0 : i32
    %5 = arith.cmpi eq, %arg2, %c0_i32_2 : i32
    %6 = arith.extui %5 : i1 to i32
    %c0_i32_3 = arith.constant 0 : i32
    %7 = arith.cmpi ne, %6, %c0_i32_3 : i32
    scf.if %7 {
      %cst_15 = arith.constant 0.000000e+00 : f32
      %21 = vector.broadcast %cst_15 : f32 to vector<2x4xf32>
      %c0_16 = arith.constant 0 : index
      %c0_17 = arith.constant 0 : index
      %22 = vector.load %arg7[%c0_16, %c0_17] : memref<2x4xf32, #tpu.memory_space<vmem>>, vector<2x4xf32>
      tpu.vector_store %arg7[%c0_16, %c0_17], %21 {strides = array<i32>} : memref<2x4xf32, #tpu.memory_space<vmem>>, vector<2x4xf32>,
    } else {
    }
    %c0 = arith.constant 0 : index
    %c0_4 = arith.constant 0 : index
    %8 = vector.load %arg7[%c0, %c0_4] : memref<2x4xf32, #tpu.memory_space<vmem>>, vector<2x4xf32>
    %c0_5 = arith.constant 0 : index
    %c0_6 = arith.constant 0 : index
    %c0_7 = arith.constant 0 : index
    %9 = vector.load %arg3[%c0_5, %c0_6, %c0_7] : memref<2x4x256xf32, #tpu.memory_space<vmem>>, vector<2x4x256xf32>
    %cst = arith.constant dense<0.000000e+00> : vector<2x4xf32>
    %10 = vector.multi_reduction <add>, %9, %cst [2] : vector<2x4x256xf32> to vector<2x4xf32>
    %11 = arith.addf %8, %10 : vector<2x4xf32>
    %c0_8 = arith.constant 0 : index
    %c0_9 = arith.constant 0 : index
    %12 = vector.load %arg7[%c0_8, %c0_9] : memref<2x4xf32, #tpu.memory_space<vmem>>, vector<2x4xf32>
    tpu.vector_store %arg7[%c0_8, %c0_9], %11 {strides = array<i32>} : memref<2x4xf32, #tpu.memory_space<vmem>>, vector<2x4xf32>,
    %c0_i32_10 = arith.constant 0 : i32
    %13 = arith.cmpi eq, %arg2, %c0_i32_10 : i32
    %14 = arith.extui %13 : i1 to i32
    %c0_i32_11 = arith.constant 0 : i32
    %15 = arith.cmpi ne, %14, %c0_i32_11 : i32
    scf.if %15 {
      %c0_15 = arith.constant 0 : index
      %c0_16 = arith.constant 0 : index
      %21 = vector.load %arg8[%c0_15, %c0_16] : memref<2x128xf32, #tpu.memory_space<vmem>>, vector<2x128xf32>
      %c0_17 = arith.constant 0 : index
      %c0_18 = arith.constant 0 : index
      %22 = vector.load %arg7[%c0_17, %c0_18] : memref<2x4xf32, #tpu.memory_space<vmem>>, vector<2x4xf32>
      %cst_19 = arith.constant 3.906250e-03 : f32
      %23 = vector.broadcast %cst_19 : f32 to vector<2x4xf32>
      %24 = arith.mulf %22, %23 : vector<2x4xf32>
      %c0_20 = arith.constant 0 : index
      %c0_21 = arith.constant 0 : index
      %25 = vector.load %arg4[%c0_20, %c0_21] : memref<4x128xf32, #tpu.memory_space<vmem>>, vector<4x128xf32>
      %cst_22 = arith.constant dense<0.000000e+00> : vector<2x128xf32>
      %26 = tpu.matmul %24, %25, %cst_22 {dimension_numbers = #tpu.dot_dimension_numbers<[1], [0], [0], [1], [0, 0, 1, 1], [], []>} : vector<2x4xf32>, vector<4x128xf32>, vector<2x128xf32> -> vector<2x128xf32>
      %27 = arith.addf %21, %26 : vector<2x128xf32>
      %c0_23 = arith.constant 0 : index
      %c0_24 = arith.constant 0 : index
      %28 = vector.load %arg8[%c0_23, %c0_24] : memref<2x128xf32, #tpu.memory_space<vmem>>, vector<2x128xf32>
      tpu.vector_store %arg8[%c0_23, %c0_24], %27 {strides = array<i32>} : memref<2x128xf32, #tpu.memory_space<vmem>>, vector<2x128xf32>,
    } else {
    }
    %c0_i32_12 = arith.constant 0 : i32
    %16 = arith.cmpi eq, %arg1, %c0_i32_12 : i32
    %c0_i32_13 = arith.constant 0 : i32
    %17 = arith.cmpi eq, %arg2, %c0_i32_13 : i32
    %18 = arith.andi %16, %17 : i1
    %19 = arith.extui %18 : i1 to i32
    %c0_i32_14 = arith.constant 0 : i32
    %20 = arith.cmpi ne, %19, %c0_i32_14 : i32
    scf.if %20 {
      %c0_15 = arith.constant 0 : index
      %c0_16 = arith.constant 0 : index
      %21 = vector.load %arg8[%c0_15, %c0_16] : memref<2x128xf32, #tpu.memory_space<vmem>>, vector<2x128xf32>
      %c0_17 = arith.constant 0 : index
      %c0_18 = arith.constant 0 : index
      %22 = vector.load %arg5[%c0_17, %c0_18] : memref<1x128xf32, #tpu.memory_space<vmem>>, vector<1x128xf32>
      %23 = vector.broadcast %22 : vector<1x128xf32> to vector<2x128xf32>
      %24 = arith.addf %21, %23 : vector<2x128xf32>
      %c0_19 = arith.constant 0 : index
      %c0_20 = arith.constant 0 : index
      %25 = vector.load %arg6[%c0_19, %c0_20] : memref<2x128xf32, #tpu.memory_space<vmem>>, vector<2x128xf32>
      tpu.vector_store %arg6[%c0_19, %c0_20], %24 {strides = array<i32>} : memref<2x128xf32, #tpu.memory_space<vmem>>, vector<2x128xf32>,
    } else {
    }
    return
  }
  func.func @transform_0(%arg0: i32, %arg1: i32, %arg2: i32) -> (i32, i32, i32) {
    %c0_i32 = arith.constant 0 : i32
    return %arg0, %arg1, %arg2 : i32, i32, i32
  }
  func.func @transform_1(%arg0: i32, %arg1: i32, %arg2: i32) -> (i32, i32) {
    %c0_i32 = arith.constant 0 : i32
    %c0_i32_0 = arith.constant 0 : i32
    return %arg1, %c0_i32 : i32, i32
  }
  func.func @transform_2(%arg0: i32, %arg1: i32, %arg2: i32) -> (i32, i32) {
    %c0_i32 = arith.constant 0 : i32
    %c0_i32_0 = arith.constant 0 : i32
    %c0_i32_1 = arith.constant 0 : i32
    return %c0_i32, %c0_i32_0 : i32, i32
  }
  func.func @transform_3(%arg0: i32, %arg1: i32, %arg2: i32) -> (i32, i32) {
    %c0_i32 = arith.constant 0 : i32
    %c0_i32_0 = arith.constant 0 : i32
    return %arg0, %c0_i32 : i32, i32
  }
}

</mosaic_0001>

<llo_original>
// kernel: random_ens_forward.1
$region0: #{random_ens_forward.1}
  #allocation0 [shape = 'u32[]', space=smem, size = 0x4, offset = 0x4, fixed_abs, tag = 'smem constant byte address 0x4 - core index']
  #allocation1 [shape = 'u32[72,128]{1,0:T(1,128)}', space=vmem, size = 0x9000, scoped, tag = 'internal scratch']
  #allocation2 [shape = 'f32[2,4]{1,0:T(2,128)}', space=vmem, size = 0x400, scoped, tag = 'scratch operand']
  #allocation3 [shape = 'f32[2,128]{1,0:T(2,128)}', space=vmem, size = 0x400, scoped, tag = 'scratch operand']
  %s0 = inlined_call_operand.vmem [shape: f32[2,4,256], index: 0, kind: input, shape index: {}]
  %s1 = inlined_call_operand.vmem [shape: f32[4,128], index: 1, kind: input, shape index: {}]
  %s2 = inlined_call_operand.vmem [shape: f32[1,128], index: 2, kind: input, shape index: {}]
  %s3 = inlined_call_operand.vmem [shape: f32[2,128], index: 3, kind: output, shape index: {}]
  %s4 = sld [smem:[#allocation0]]
  $region38: #{random_ens_forward.1} parent=0
    _
  %s6 = ssub.s32 1, %s4
  %s7 = scalar_select 0, %s6, %s4
  // Predicated region
  $region2: #{random_ens_forward.1} parent=0 // pred_check
    _
  $region3: #{random_ens_forward.1} parent=0 // pred_check_branch
    %9 = sbr.rel (0) target = $region5
  $region4: #{random_ens_forward.1} parent=0 // pred_region
    _
  $region5: #{random_ens_forward.1} parent=0 // pred_fallthru
    _
  // Predicated region
  $region6: #{random_ens_forward.1} parent=0 // pred_check
    _
  $region7: #{random_ens_forward.1} parent=0 // pred_check_branch
    %11 = sbr.rel (0) target = $region9
  $region8: #{random_ens_forward.1} parent=0 // pred_region
    _
  $region9: #{random_ens_forward.1} parent=0 // pred_fallthru
    _
  // Predicated region
  $region10: #{random_ens_forward.1} parent=0 // pred_check
    _
  $region11: #{random_ens_forward.1} parent=0 // pred_check_branch
    %13 = sbr.rel (0) target = $region13
  $region12: #{random_ens_forward.1} parent=0 // pred_region
    _
  $region13: #{random_ens_forward.1} parent=0 // pred_fallthru
    _
  %p14 = scmp.eq.s32.totalorder 0, 0
  %p15 = scmp.eq.s32.totalorder 0, 0
  %p16 = pnand %p14, %p15
  %p17 = pneg %p16
  // Predicated region
  $region14: #{random_ens_forward.1} parent=0 // pred_check
    _
  $region15: #{random_ens_forward.1} parent=0 // pred_check_branch
    %19 = sbr.rel (%p16) target = $region17
  $region16: #{random_ens_forward.1} parent=0 // pred_region
    %20 = vst [vmem:[#allocation3] sm:$0x3] 0.0
  $region17: #{random_ens_forward.1} parent=0 // pred_fallthru
    _
  // Predicated region
  $region18: #{random_ens_forward.1} parent=0 // pred_check
    %p21 = pneg %p15
  $region19: #{random_ens_forward.1} parent=0 // pred_check_branch
    %23 = sbr.rel (%p21) target = $region21
  $region20: #{random_ens_forward.1} parent=0 // pred_region
    %vm24 = vcmask 25600
    %25 = vst.msk [vmem:[#allocation2] sm:$0x3] %vm24, 0.0
  $region21: #{random_ens_forward.1} parent=0 // pred_fallthru
    _
  %v26 = vld [vmem:[#allocation2] sm:$0x3]
  %v27 = vld [vmem:[%s0] sm:$0xff]
  %v28 = vld [vmem:[%s0 + $0x8] sm:$0xff]
  %31 = vst [vmem:[#allocation1] ss:$2 sm:$0xff] %v27
  %v32 = vld.sshfl [vmem:[#allocation1] sm:$0xff pattern:$0x75316420]
  %v33 = vld.sshfl [vmem:[#allocation1 + $0x8] sm:$0xff pattern:$0x75316420]
  %s34 = scalar_lea.vmem [#allocation1], 16
  %35 = vst [vmem:[%s34] ss:$2 sm:$0xff] %v28
  %v36 = vld.sshfl [vmem:[#allocation1 + $0x10] sm:$0xff pattern:$0x75316420]
  %v37 = vld.sshfl [vmem:[#allocation1 + $0x18] sm:$0xff pattern:$0x75316420]
  %vm42 = vcmask 1043456
  %v43 = vsel %vm42, %v32, 0.0
  %v44 = vsel %vm42, %v33, 0.0
  %v45 = vadd.f32 %v43, %v44
  %46 = vadd.xlane.f32.xlu0 %v45
  %v47 = vpop.xlane.xlu0 %46
  %v48 = vsel %vm42, %v36, 0.0
  %v49 = vsel %vm42, %v37, 0.0
  %v50 = vadd.f32 %v48, %v49
  %51 = vadd.xlane.f32.xlu0 %v50
  %v52 = vpop.xlane.xlu0 %51
  %v55 = vlaneseq
  %v56 = vand.u32 %v55, 127
  %v57 = vperm.slane %v47, %v56
  %v58 = vperm.slane %v52, %v56
  %vm59 = vcmask 1041409
  %v60 = vsel %vm59, %v58, %v57
  %v62 = vadd.f32 %v26, %v60
  %vm63 = vcmask 25600
  %64 = vst.msk [vmem:[#allocation2] sm:$0x3] %vm63, %v62
  // Predicated region
  $region22: #{random_ens_forward.1} parent=0 // pred_check
    %p65 = pneg %p15
  $region23: #{random_ens_forward.1} parent=0 // pred_check_branch
    %67 = sbr.rel (%p65) target = $region25
  $region24: #{random_ens_forward.1} parent=0 // pred_region
    %v68 = vld [vmem:[#allocation3] sm:$0x3]
    %v69 = vld [vmem:[#allocation2] sm:$0x3]
    %v70 = vmul.f32 %v69, 0.00390625
    %v71 = vld [vmem:[%s1] sm:$0xf]
    %vm72 = vcmask 31744
    %v74 = vsel %vm72, %v70, 0
    %v77 = vsel %vm42, %v71, 0
    %79 = vmatpush.msra.mxu0 0.0
    %80 = vmatpush.msra.mxu0 0.0
    %81 = vmatpush.msra.mxu0 0.0
    %82 = vmatpush.msra.mxu0 0.0
    %83 = vmatpush.msra.mxu0 0.0
    %84 = vmatpush.msra.mxu0 0.0
    %85 = vmatpush.msra.mxu0 0.0
    %86 = vmatpush.msra.mxu0 0.0
    %87 = vmatpush.msra.mxu0 0.0
    %88 = vmatpush.msra.mxu0 0.0
    %89 = vmatpush.msra.mxu0 0.0
    %90 = vmatpush.msra.mxu0 0.0
    %91 = vmatpush.msra.mxu0 0.0
    %92 = vmatpush.msra.mxu0 0.0
    %93 = vmatpush.msra.mxu0 0.0
    %94 = vmatpush.msra.mxu0 %v77
    %95 = vmatmul.f32.gmra.mxu0 %v74
    %v96 = vpop.f32.mrf.mxu0
    %v97 = vadd.f32 0.0, %v96
    %98 = vdwg.mxu0
    %v99 = vadd.f32 %v68, %v97
    %100 = vst [vmem:[#allocation3] sm:$0x3] %v99
  $region25: #{random_ens_forward.1} parent=0 // pred_fallthru
    _
  // Predicated region
  $region26: #{random_ens_forward.1} parent=0 // pred_check
    _
  $region27: #{random_ens_forward.1} parent=0 // pred_check_branch
    %102 = sbr.rel (%p16) target = $region29
  $region28: #{random_ens_forward.1} parent=0 // pred_region
    %v103 = vld [vmem:[#allocation3] sm:$0x3]
    %v104 = vld [vmem:[%s2] sm:$0x1]
    %v106 = vperm.slane %v104, 0
    %v108 = vadd.f32 %v103, %v106
    %109 = vst [vmem:[%s3] sm:$0x3] %v108
  $region29: #{random_ens_forward.1} parent=0 // pred_fallthru
    _
  // Predicated region
  $region30: #{random_ens_forward.1} parent=0 // pred_check
    _
  $region31: #{random_ens_forward.1} parent=0 // pred_check_branch
    %111 = sbr.rel (0) target = $region33
  $region32: #{random_ens_forward.1} parent=0 // pred_region
    _
  $region33: #{random_ens_forward.1} parent=0 // pred_fallthru
    _
  // Predicated region
  $region34: #{random_ens_forward.1} parent=0 // pred_check
    _
  $region35: #{random_ens_forward.1} parent=0 // pred_check_branch
    %113 = sbr.rel (0) target = $region37
  $region36: #{random_ens_forward.1} parent=0 // pred_region
    _
  $region37: #{random_ens_forward.1} parent=0 // pred_fallthru
    _

</llo_original>
